<compile_context>
chip_gen: v7x
topology: tpu7x:2x2x1
jax: 0.10.0
libtpu: 0.0.40
codegen_flags: <defaults>
</compile_context>

<pallas_src>
import jax
import jax.numpy as jnp
from jax import lax
from jax.experimental import pallas as pl
from jax.experimental.pallas import tpu as pltpu


def _rconv_kernel(x_ref, cv1_ref, cv2_ref, o_ref):
    # x_ref:   (NB, H, W*C1)      NB samples, NHWC rows (lane index = w*C1 + c)
    # cv1_ref: (2, W*C1)          row 0 = tile(w1, W), row 1 = tile(b1, W)
    # cv2_ref: (W*C1 + 2, Wp*C2)  rows [0, W*C1): block-diag conv2 weight (col-shifted by 1)
    #                             row  W*C1     : per-lane bias (border at edge cols, b2 inside)
    #                             row  W*C1 + 1 : border constant tiled across the padded row
    # o_ref:   (NB, Hp, Wp*C2)    padded NHWC output rows, lane-dense
    NB, H, WC1 = x_ref.shape
    _, Hp, WpC2 = o_ref.shape

    # conv1 (depthwise 1x1 scale + bias) + ReLU, fully lane-dense on the VPU.
    w1t = cv1_ref[0:1, :]                                     # (1, W*C1)
    b1t = cv1_ref[1:2, :]                                     # (1, W*C1)
    a = jnp.maximum(x_ref[...] * w1t + b1t, 0.0)              # (NB, H, W*C1)

    # conv2 (1x1) as a single block-diagonal matmul on the MXU.  The weight
    # simultaneously applies W2 and lays the result out in lane-dense
    # padded-NHWC row order (left/right borders baked into the bias row).
    a2 = a.reshape(NB * H, WC1)                               # free: H % 8 == 0
    y = lax.dot_general(
        a2, cv2_ref[0:WC1, :],
        dimension_numbers=(((1,), (0,)), ((), ())),
        precision=lax.Precision.HIGHEST,
        preferred_element_type=jnp.float32,
    ) + cv2_ref[WC1:WC1 + 1, :]                               # (NB*H, Wp*C2)

    # Three dense stores: top border row, bottom border row, interior rows.
    border_row = cv2_ref[WC1 + 1:WC1 + 2, :]                  # (1, Wp*C2)
    o_ref[:, 0:1, :] = jnp.broadcast_to(border_row, (NB, 1, WpC2))
    o_ref[:, Hp - 1:Hp, :] = jnp.broadcast_to(border_row, (NB, 1, WpC2))
    o_ref[:, 1:Hp - 1, :] = y.reshape(NB, H, WpC2).astype(o_ref.dtype)


def _pick_nb(n, cap=8):
    """Largest divisor of n (<= cap), preferring an even grid length so both
    v7x TensorCores get work."""
    divs = [d for d in range(1, min(n, cap) + 1) if n % d == 0]
    even = [d for d in divs if (n // d) % 2 == 0]
    return max(even) if even else max(divs)


def _round_up(x, m):
    return -(-x // m) * m


def rconv_forward(x_nchw, w1, b1, w2, b2, *, p=1):
    """RConv forward. x_nchw: [N, C1, H, W] float32. Returns NHWC [N, H+2p, W+2p, C2]."""
    assert p == 1, "kernel specialized to the module default p=1"
    N, C1, H, W = x_nchw.shape
    C2 = w2.shape[0]
    Hp, Wp = H + 2 * p, W + 2 * p

    # Input relayout on the small (C1=4) side: NCHW -> (N, H, W*C1) NHWC rows.
    # One XLA pass over the input; it buys fully lane-dense compute and stores.
    x_rows = jnp.transpose(x_nchw, (0, 2, 3, 1)).reshape(N, H, W * C1)

    # --- packed parameters (2 arrays instead of 5+) -------------------------
    w2m = w2.reshape(C2, C1).astype(jnp.float32)
    w2t = jnp.transpose(w2m)                                   # (C1, C2)

    # conv1 scale/bias tiled onto the (w, c) lane order.
    cv1 = jnp.stack([jnp.tile(w1.astype(jnp.float32), W),
                     jnp.tile(b1.astype(jnp.float32), W)], axis=0)          # (2, W*C1)

    # Block-diagonal conv2 weight with a +1 column shift (padding column 0 and
    # Wp-1 get no input contribution): (W*C1, Wp*C2).
    shift = jnp.zeros((W, Wp), jnp.float32)
    shift = shift.at[jnp.arange(W), jnp.arange(1, W + 1)].set(1.0)
    wblk = jnp.kron(shift, w2t)                                             # (W*C1, Wp*C2)

    # Border pixels see zero input: conv1 -> b1, ReLU, conv2 -> constant.
    # Computed with exact f32 elementwise math (matches HIGHEST-precision ref).
    border = jnp.sum(jnp.maximum(b1.astype(jnp.float32), 0.0)[:, None] * w2t,
                     axis=0) + b2.astype(jnp.float32)                       # (C2,)

    bias_rows = jnp.tile(b2.astype(jnp.float32)[None, :], (Wp, 1))          # (Wp, C2)
    bias_rows = bias_rows.at[0, :].set(border).at[Wp - 1, :].set(border)
    bias_full = bias_rows.reshape(1, Wp * C2)                               # (1, Wp*C2)
    border_row = jnp.tile(border[None, :], (1, Wp))                         # (1, Wp*C2)

    cv2 = jnp.concatenate([wblk, bias_full, border_row], axis=0)            # (W*C1+2, Wp*C2)

    # --- grid / VMEM sizing --------------------------------------------------
    nb = _pick_nb(N)
    grid = (N // nb,)

    blk_bytes = 4 * (
        2 * nb * _round_up(H, 8) * _round_up(W * C1, 128)            # x (double-buffered)
        + 2 * nb * _round_up(Hp, 8) * _round_up(Wp * C2, 128)        # out (double-buffered)
        + 2 * _round_up(2, 8) * _round_up(W * C1, 128)               # cv1
        + 2 * _round_up(W * C1 + 2, 8) * _round_up(Wp * C2, 128)     # cv2
    )
    vmem_limit = int(min(max(blk_bytes + (1 << 20), 4 << 20), 64 << 20))

    out2d = pl.pallas_call(
        _rconv_kernel,
        out_shape=jax.ShapeDtypeStruct((N, Hp, Wp * C2), jnp.float32),
        grid_spec=pltpu.PrefetchScalarGridSpec(
            num_scalar_prefetch=0,
            grid=grid,
            in_specs=[
                pl.BlockSpec((nb, H, W * C1), lambda n: (n, 0, 0)),
                pl.BlockSpec((2, W * C1), lambda n: (0, 0)),
                pl.BlockSpec((W * C1 + 2, Wp * C2), lambda n: (0, 0)),
            ],
            out_specs=pl.BlockSpec((nb, Hp, Wp * C2), lambda n: (n, 0, 0)),
        ),
        compiler_params=pltpu.CompilerParams(
            dimension_semantics=("parallel",),     # shard sample-blocks across TCs
            vmem_limit_bytes=vmem_limit,
        ),
    )(x_rows, cv1, cv2)

    # Free contiguous reshape back to NHWC.
    return out2d.reshape(N, Hp, Wp, C2)


def _reference(x_nchw, w1, b1, w2, b2, p=1):
    """Plain-JAX reference of the PyTorch forward (NCHW in -> NHWC out)."""
    N, C1, H, W = x_nchw.shape
    C2 = w2.shape[0]
    x_pad = jnp.pad(x_nchw, ((0, 0), (0, 0), (p, p), (p, p)))
    a = jnp.maximum(x_pad * w1[None, :, None, None] + b1[None, :, None, None], 0.0)
    y = jnp.einsum('nchw,oc->nohw', a, w2.reshape(C2, C1),
                   precision=lax.Precision.HIGHEST) + b2[None, :, None, None]
    return jnp.transpose(y, (0, 2, 3, 1))


if __name__ == "__main__":
    # RConv(c1=4, c2=8) with defaults k=1, s=1, p=1, d=1, act=ReLU
    N, C1, C2, H, W = 2, 4, 8, 16, 16

    key = jax.random.PRNGKey(0)
    kx, k1, k2, k3, k4 = jax.random.split(key, 5)

    x = jax.random.normal(kx, (N, C1, H, W), dtype=jnp.float32)
    # conv1: nn.Conv2d(c1, c1, 1, groups=c1) -> weight [c1,1,1,1], bias [c1]
    w1 = jax.random.normal(k1, (C1,), dtype=jnp.float32) * 0.5
    b1 = jax.random.normal(k2, (C1,), dtype=jnp.float32) * 0.1
    # conv2: nn.Conv2d(c1, c2, 1) -> weight [c2,c1,1,1], bias [c2]
    w2 = jax.random.normal(k3, (C2, C1), dtype=jnp.float32) * 0.5
    b2 = jax.random.normal(k4, (C2,), dtype=jnp.float32) * 0.1

    out = rconv_forward(x, w1, b1, w2, b2)
    out = jax.block_until_ready(out)

    ref = _reference(x, w1, b1, w2, b2)
    assert out.shape == (N, H + 2, W + 2, C2), out.shape
    assert jnp.allclose(out, ref, atol=1e-5, rtol=1e-5), "mismatch vs reference"
    print("KERNEL_OK")
</pallas_src>

<mosaic_0001>
module attributes {stable_mosaic.version = 11 : i64} {
  func.func @_rconv_kernel(%arg0: i32, %arg1: memref<1x16x64xf32, #tpu.memory_space<vmem>>, %arg2: memref<2x64xf32, #tpu.memory_space<vmem>>, %arg3: memref<66x144xf32, #tpu.memory_space<vmem>>, %arg4: memref<1x18x144xf32, #tpu.memory_space<vmem>>) attributes {dimension_semantics = [#tpu.dimension_semantics<parallel>], iteration_bounds = array<i64: 2>, scalar_prefetch = 0 : i64, scratch_operands = 0 : i64, tpu.core_type = #tpu.core_type<tc>, window_params = [{transform_indices = @transform_0, window_bounds = array<i64: 1, 16, 64>}, {pipeline_mode = #tpu.pipeline_mode<synchronous>, transform_indices = @transform_1, window_bounds = array<i64: 2, 64>}, {pipeline_mode = #tpu.pipeline_mode<synchronous>, transform_indices = @transform_2, window_bounds = array<i64: 66, 144>}, {transform_indices = @transform_3, window_bounds = array<i64: 1, 18, 144>}]} {
    %c0 = arith.constant 0 : index
    %c0_0 = arith.constant 0 : index
    %0 = vector.load %arg2[%c0, %c0_0] : memref<2x64xf32, #tpu.memory_space<vmem>>, vector<1x64xf32>
    %c1 = arith.constant 1 : index
    %c0_1 = arith.constant 0 : index
    %1 = vector.load %arg2[%c1, %c0_1] : memref<2x64xf32, #tpu.memory_space<vmem>>, vector<1x64xf32>
    %c0_2 = arith.constant 0 : index
    %c0_3 = arith.constant 0 : index
    %c0_4 = arith.constant 0 : index
    %2 = vector.load %arg1[%c0_2, %c0_3, %c0_4] : memref<1x16x64xf32, #tpu.memory_space<vmem>>, vector<1x16x64xf32>
    %3 = vector.shape_cast %0 : vector<1x64xf32> to vector<1x1x64xf32>
    %4 = vector.broadcast %3 : vector<1x1x64xf32> to vector<1x16x64xf32>
    %5 = arith.mulf %2, %4 : vector<1x16x64xf32>
    %6 = vector.shape_cast %1 : vector<1x64xf32> to vector<1x1x64xf32>
    %7 = vector.broadcast %6 : vector<1x1x64xf32> to vector<1x16x64xf32>
    %8 = arith.addf %5, %7 : vector<1x16x64xf32>
    %cst = arith.constant 0.000000e+00 : f32
    %9 = vector.broadcast %cst : f32 to vector<1x16x64xf32>
    %10 = arith.maximumf %8, %9 : vector<1x16x64xf32>
    %11 = vector.shape_cast %10 : vector<1x16x64xf32> to vector<16x64xf32>
    %c0_5 = arith.constant 0 : index
    %c0_6 = arith.constant 0 : index
    %12 = vector.load %arg3[%c0_5, %c0_6] : memref<66x144xf32, #tpu.memory_space<vmem>>, vector<64x144xf32>
    %cst_7 = arith.constant dense<0.000000e+00> : vector<16x144xf32>
    %13 = tpu.matmul %11, %12, %cst_7 {dimension_numbers = #tpu.dot_dimension_numbers<[1], [0], [0], [1], [0, 0, 1, 1], [], []>, precision = #tpu.contract_precision<fp32>} : vector<16x64xf32>, vector<64x144xf32>, vector<16x144xf32> -> vector<16x144xf32>
    %c64 = arith.constant 64 : index
    %c0_8 = arith.constant 0 : index
    %14 = vector.load %arg3[%c64, %c0_8] : memref<66x144xf32, #tpu.memory_space<vmem>>, vector<1x144xf32>
    %15 = vector.broadcast %14 : vector<1x144xf32> to vector<16x144xf32>
    %16 = arith.addf %13, %15 : vector<16x144xf32>
    %c65 = arith.constant 65 : index
    %c0_9 = arith.constant 0 : index
    %17 = vector.load %arg3[%c65, %c0_9] : memref<66x144xf32, #tpu.memory_space<vmem>>, vector<1x144xf32>
    %18 = vector.shape_cast %17 : vector<1x144xf32> to vector<1x1x144xf32>
    %c0_10 = arith.constant 0 : index
    %c0_11 = arith.constant 0 : index
    %c0_12 = arith.constant 0 : index
    %19 = vector.load %arg4[%c0_10, %c0_11, %c0_12] : memref<1x18x144xf32, #tpu.memory_space<vmem>>, vector<1x1x144xf32>
    tpu.vector_store %arg4[%c0_10, %c0_11, %c0_12], %18 {strides = array<i32>} : memref<1x18x144xf32, #tpu.memory_space<vmem>>, vector<1x1x144xf32>,
    %20 = vector.shape_cast %17 : vector<1x144xf32> to vector<1x1x144xf32>
    %c0_13 = arith.constant 0 : index
    %c17 = arith.constant 17 : index
    %c0_14 = arith.constant 0 : index
    %21 = vector.load %arg4[%c0_13, %c17, %c0_14] : memref<1x18x144xf32, #tpu.memory_space<vmem>>, vector<1x1x144xf32>
    tpu.vector_store %arg4[%c0_13, %c17, %c0_14], %20 {strides = array<i32>} : memref<1x18x144xf32, #tpu.memory_space<vmem>>, vector<1x1x144xf32>,
    %22 = vector.shape_cast %16 : vector<16x144xf32> to vector<1x16x144xf32>
    %c0_15 = arith.constant 0 : index
    %c1_16 = arith.constant 1 : index
    %c0_17 = arith.constant 0 : index
    %23 = vector.load %arg4[%c0_15, %c1_16, %c0_17] : memref<1x18x144xf32, #tpu.memory_space<vmem>>, vector<1x16x144xf32>
    tpu.vector_store %arg4[%c0_15, %c1_16, %c0_17], %22 {strides = array<i32>} : memref<1x18x144xf32, #tpu.memory_space<vmem>>, vector<1x16x144xf32>,
    return
  }
  func.func @transform_0(%arg0: i32) -> (i32, i32, i32) {
    %c0_i32 = arith.constant 0 : i32
    %c0_i32_0 = arith.constant 0 : i32
    %c0_i32_1 = arith.constant 0 : i32
    return %arg0, %c0_i32, %c0_i32_0 : i32, i32, i32
  }
  func.func @transform_1(%arg0: i32) -> (i32, i32) {
    %c0_i32 = arith.constant 0 : i32
    %c0_i32_0 = arith.constant 0 : i32
    %c0_i32_1 = arith.constant 0 : i32
    return %c0_i32, %c0_i32_0 : i32, i32
  }
  func.func @transform_2(%arg0: i32) -> (i32, i32) {
    %c0_i32 = arith.constant 0 : i32
    %c0_i32_0 = arith.constant 0 : i32
    %c0_i32_1 = arith.constant 0 : i32
    return %c0_i32, %c0_i32_0 : i32, i32
  }
  func.func @transform_3(%arg0: i32) -> (i32, i32, i32) {
    %c0_i32 = arith.constant 0 : i32
    %c0_i32_0 = arith.constant 0 : i32
    %c0_i32_1 = arith.constant 0 : i32
    return %arg0, %c0_i32, %c0_i32_0 : i32, i32, i32
  }
}

</mosaic_0001>

<llo_original>
// kernel: tpu_custom_call.1
$region0: #{tpu_custom_call.1}
  #allocation0 [shape = 'u32[]', space=smem, size = 0x4, offset = 0x4, fixed_abs, tag = 'smem constant byte address 0x4 - core index']
  #allocation1 [shape = 'u32[144,128]{1,0:T(1,128)}', space=vmem, size = 0x12000, scoped, tag = 'internal scratch']
  %s0 = inlined_call_operand.hbm [shape: f32[2,16,64], index: 0, kind: input, shape index: {}]
  %s1 = inlined_call_operand.vmem [shape: f32[2,64], index: 1, kind: input, shape index: {}]
  %s2 = inlined_call_operand.hbm [shape: f32[66,144], index: 2, kind: input, shape index: {}]
  %s3 = inlined_call_operand.vmem [shape: f32[2,18,144], index: 3, kind: output, shape index: {}]
  %s4 = sld [smem:[#allocation0]]
  $region53: #{tpu_custom_call.1} parent=0
    _
  %s6 = ssub.s32 1, %s4
  %s7 = scalar_select 0, %s6, %s4
  $region1: #{tpu_custom_call.1} parent=0
    #allocation2 [shape = 'u8[16384]{0}', space=vmem, size = 0x4000, scoped, tag = 'input window, operand 0']
    #allocation3 [shape = 's32[2]{0}', space=sflag, size = 0x8, scoped, tag = 'scoped memory for tpu_custom_call.1']
    #allocation4 [shape = 'u8[73728]{0}', space=vmem, size = 0x12000, scoped, tag = 'input window, operand 2, single buffered']
    #allocation5 [shape = 's32[1]{0}', space=sflag, size = 0x4, scoped, tag = 'scoped memory for tpu_custom_call.1']
    %8 = vsyncpa [#allocation3], 0
    %s9 = scalar_lea.sflag [#allocation3], 1
    %10 = vsyncpa %s9, 0
    %11 = vsyncpa [#allocation5], 0
    loop: start=0, step=1, limit=4
    $region2: #{tpu_custom_call.1} parent=1 // loop_pre_header
      _
    $region3: #{tpu_custom_call.1} parent=1 // loop_header
      %s13 = sphi 0, %s17
      %p14 = scmp.ge.s32.totalorder %s13, 4
      %s23 = sphi 0, %s25
      %s26 = sphi 0, %s23
      %s27 = sphi 0, %s26
      %s43 = sphi 0, %s27
      %s47 = sphi 0, %s47
      %s49 = sphi 0, %s47
      %s50 = sphi 0, %s49
      %s64 = sphi 0, %s50
      %s68 = sphi 0, %s68
      %s70 = sphi 0, %s68
      %s71 = sphi 0, %s70
      %s85 = sphi 0, %s71
      %s91 = sphi 0, %s93
      %s94 = sphi 0, %s91
      %s95 = sphi 0, %s94
      %s111 = sphi 0, %s95
    $region4: #{tpu_custom_call.1} parent=1 // loop_header_branch
      %16 = sbr.rel (%p14) target = $region8
    $region5: #{tpu_custom_call.1} parent=1 // loop_body
      %s18 = ssub.s32 %s13, 1
      %s19 = ssub.s32 %s13, 2
      %s20 = sadd.s32 %s13, 1
      %s21 = ssub.s32 %s13, %s20
      %p22 = scmp.eq.s32.totalorder %s21, 0
      %s24 = sadd.s32 %s23, 1
      %s25 = scalar_select %p22, %s23, %s24
      %p28 = pneg %p22
      %p29 = scmp.eq.s32.totalorder %s13, 1
      %p30 = por %p28, %p29
      %p31 = scmp.ne.s32.totalorder %s23, %s26
      %p32 = scmp.eq.s32.totalorder %s13, 0
      %p33 = por %p31, %p32
      %p34 = scmp.ne.s32.totalorder %s23, %s26
      %p35 = scmp.eq.s32.totalorder %s18, 1
      %p36 = por %p34, %p35
      %p37 = scmp.ne.s32.totalorder %s26, %s27
      %p38 = scmp.eq.s32.totalorder %s18, 0
      %p39 = por %p37, %p38
      %p40 = scmp.ne.s32.totalorder %s26, %s27
      %p41 = scmp.eq.s32.totalorder %s19, 1
      %p42 = por %p40, %p41
      %p44 = scmp.ne.s32.totalorder %s27, %s43
      %p45 = scmp.eq.s32.totalorder %s19, 0
      %p46 = por %p44, %p45
      %s48 = sadd.s32 %s47, 1
      %p51 = scmp.eq.s32.totalorder %s13, 1
      %p52 = scmp.ne.s32.totalorder %s47, %s49
      %p53 = scmp.eq.s32.totalorder %s13, 0
      %p54 = por %p52, %p53
      %p55 = scmp.ne.s32.totalorder %s47, %s49
      %p56 = scmp.eq.s32.totalorder %s18, 1
      %p57 = por %p55, %p56
      %p58 = scmp.ne.s32.totalorder %s49, %s50
      %p59 = scmp.eq.s32.totalorder %s18, 0
      %p60 = por %p58, %p59
      %p61 = scmp.ne.s32.totalorder %s49, %s50
      %p62 = scmp.eq.s32.totalorder %s19, 1
      %p63 = por %p61, %p62
      %p65 = scmp.ne.s32.totalorder %s50, %s64
      %p66 = scmp.eq.s32.totalorder %s19, 0
      %p67 = por %p65, %p66
      %s69 = sadd.s32 %s68, 1
      %p72 = scmp.eq.s32.totalorder %s13, 1
      %p73 = scmp.ne.s32.totalorder %s68, %s70
      %p74 = scmp.eq.s32.totalorder %s13, 0
      %p75 = por %p73, %p74
      %p76 = scmp.ne.s32.totalorder %s68, %s70
      %p77 = scmp.eq.s32.totalorder %s18, 1
      %p78 = por %p76, %p77
      %p79 = scmp.ne.s32.totalorder %s70, %s71
      %p80 = scmp.eq.s32.totalorder %s18, 0
      %p81 = por %p79, %p80
      %p82 = scmp.ne.s32.totalorder %s70, %s71
      %p83 = scmp.eq.s32.totalorder %s19, 1
      %p84 = por %p82, %p83
      %p86 = scmp.ne.s32.totalorder %s71, %s85
      %p87 = scmp.eq.s32.totalorder %s19, 0
      %p88 = por %p86, %p87
      %s89 = ssub.s32 %s13, %s20
      %p90 = scmp.eq.s32.totalorder %s89, 0
      %s92 = sadd.s32 %s91, 1
      %s93 = scalar_select %p90, %s91, %s92
      %p96 = pneg %p90
      %p97 = scmp.eq.s32.totalorder %s13, 1
      %p98 = por %p96, %p97
      %p99 = scmp.ne.s32.totalorder %s91, %s94
      %p100 = scmp.eq.s32.totalorder %s13, 0
      %p101 = por %p99, %p100
      %p102 = scmp.ne.s32.totalorder %s91, %s94
      %p103 = scmp.eq.s32.totalorder %s18, 1
      %p104 = por %p102, %p103
      %p105 = scmp.ne.s32.totalorder %s94, %s95
      %p106 = scmp.eq.s32.totalorder %s18, 0
      %p107 = por %p105, %p106
      %p108 = scmp.ne.s32.totalorder %s94, %s95
      %p109 = scmp.eq.s32.totalorder %s19, 1
      %p110 = por %p108, %p109
      %p112 = scmp.ne.s32.totalorder %s95, %s111
      %p113 = scmp.eq.s32.totalorder %s19, 0
      %p114 = por %p112, %p113
      %p115 = scmp.le.s32.totalorder 1, %s13
      %p116 = scmp.lt.s32.totalorder %s13, 3
      %p117 = pnand %p115, %p116
      %p118 = pneg %p117
      // Predicated region
      $region9: #{tpu_custom_call.1} parent=5 // pred_check
        _
      $region10: #{tpu_custom_call.1} parent=5 // pred_check_branch
        %120 = sbr.rel (%p117) target = $region12
      $region11: #{tpu_custom_call.1} parent=5 // pred_region
        %s121 = ssub.s32 %s13, 1
        // Predicated region
        $region13: #{tpu_custom_call.1} parent=11 // pred_check
          %p122 = pneg %p60
        $region14: #{tpu_custom_call.1} parent=11 // pred_check_branch
          %124 = sbr.rel (%p122) target = $region16
        $region15: #{tpu_custom_call.1} parent=11 // pred_region
          _
        $region16: #{tpu_custom_call.1} parent=11 // pred_fallthru
          _
        // Predicated region
        $region17: #{tpu_custom_call.1} parent=11 // pred_check
          %p125 = pneg %p81
        $region18: #{tpu_custom_call.1} parent=11 // pred_check_branch
          %127 = sbr.rel (%p125) target = $region20
        $region19: #{tpu_custom_call.1} parent=11 // pred_region
          %s129 = ssub.s32 2304, 2304
          %130 = vsyncadd [#allocation5], %s129
          %s131 = sshll.u32 [#allocation4], 4
          %s132 = int_to_ptr.vmem [resolvable:$true] %s131
          %137 = dma.hbm_to_vmem [thread:$0]  %s2, 2304, %s132, [#allocation5], 256, 256, 16
        $region20: #{tpu_custom_call.1} parent=11 // pred_fallthru
          _
      $region12: #{tpu_custom_call.1} parent=5 // pred_fallthru
        _
      %p138 = scmp.lt.s32.totalorder %s13, 2
      // Predicated region
      $region21: #{tpu_custom_call.1} parent=5 // pred_check
        %p139 = pneg %p138
      $region22: #{tpu_custom_call.1} parent=5 // pred_check_branch
        %141 = sbr.rel (%p139) target = $region24
      $region23: #{tpu_custom_call.1} parent=5 // pred_region
        // Predicated region
        $region25: #{tpu_custom_call.1} parent=23 // pred_check
          %p142 = pneg %p33
        $region26: #{tpu_custom_call.1} parent=23 // pred_check_branch
          %144 = sbr.rel (%p142) target = $region28
        $region27: #{tpu_custom_call.1} parent=23 // pred_region
          %s145 = sand.u32 %s23, 1
          %s146 = scalar_lea.sflag [#allocation3], %s145
          %s147 = sand.u32 %s23, 1
          %s148 = smul.addr %s147, 16
          %s149 = scalar_lea.vmem [#allocation2], %s148
          %s151 = ssub.s32 256, 256
          %152 = vsyncadd %s146, %s151
          %s153 = smul.addr %s13, 2
          %s154 = smul.addr %s153, 128
          %s155 = scalar_lea.hbm %s0, %s154
          %s156 = sshll.u32 %s149, 4
          %s157 = int_to_ptr.vmem [resolvable:$true] %s156
          %162 = dma.hbm_to_vmem [thread:$0]  %s155, 256, %s157, %s146, 128, 128, 8
        $region28: #{tpu_custom_call.1} parent=23 // pred_fallthru
          _
      $region24: #{tpu_custom_call.1} parent=5 // pred_fallthru
        _
      %p163 = scmp.le.s32.totalorder 1, %s13
      %p164 = scmp.lt.s32.totalorder %s13, 3
      %p165 = pnand %p163, %p164
      %p166 = pneg %p165
      // Predicated region
      $region29: #{tpu_custom_call.1} parent=5 // pred_check
        _
      $region30: #{tpu_custom_call.1} parent=5 // pred_check_branch
        %168 = sbr.rel (%p165) target = $region32
      $region31: #{tpu_custom_call.1} parent=5 // pred_region
        %s169 = ssub.s32 %s13, 1
        %s170 = sand.u32 %s26, 1
        %s171 = scalar_lea.sflag [#allocation3], %s170
        %s172 = sand.u32 %s26, 1
        %s173 = smul.addr %s172, 16
        %s174 = scalar_lea.vmem [#allocation2], %s173
        // Predicated region
        $region33: #{tpu_custom_call.1} parent=31 // pred_check
          %p175 = pneg %p39
        $region34: #{tpu_custom_call.1} parent=31 // pred_check_branch
          %177 = sbr.rel (%p175) target = $region36
        $region35: #{tpu_custom_call.1} parent=31 // pred_region
          %178 = dma.done %s171, 256
        $region36: #{tpu_custom_call.1} parent=31 // pred_fallthru
          _
        // Predicated region
        $region37: #{tpu_custom_call.1} parent=31 // pred_check
          %p179 = pneg %p81
        $region38: #{tpu_custom_call.1} parent=31 // pred_check_branch
          %181 = sbr.rel (%p179) target = $region40
        $region39: #{tpu_custom_call.1} parent=31 // pred_region
          %182 = dma.done [#allocation5], 2304
        $region40: #{tpu_custom_call.1} parent=31 // pred_fallthru
          _
        %s183 = sand.u32 %s26, 1
        %s184 = scalar_lea.sflag [#allocation3], %s183
        %s185 = sand.u32 %s26, 1
        %s186 = smul.addr %s185, 16
        %s187 = scalar_lea.vmem [#allocation2], %s186
        %p188 = pneg %p39
        %p189 = pneg %p36
        %p190 = pneg %p60
        %p191 = pneg %p57
        %p192 = pneg %p81
        %p193 = pneg %p78
        %p194 = pneg %p107
        %p195 = pneg %p104
        %p196 = scmp.lt.s32.totalorder %s18, 1
        %s197 = scalar_select %p196, %s18, 1
        %s198 = smul.addr %s197, 6
        %s199 = smul.addr %s198, 8
        %s200 = scalar_lea.vmem %s3, %s199
        %p201 = scmp.lt.s32.totalorder %s18, 1
        %s202 = scalar_select %p201, %s18, 1
        %s203 = smul.addr %s202, 6
        %s204 = smul.addr %s203, 8
        %s205 = scalar_lea.vmem %s3, %s204
        %v206 = vld [vmem:[%s1] sm:$0x1]
        %v207 = vld [vmem:[%s1 + $0x1] sm:$0x1]
        %v208 = vld [vmem:[%s174] sm:$0xff]
        %v209 = vld [vmem:[%s174 + $0x8] sm:$0xff]
        %v210 = vlaneseq
        %v211 = vshrl.u32 %v210, 7
        %v212 = vsub.s32 0, %v211
        %v213 = vrot.slane %v206, %v212
        %v214 = vmul.f32 %v208, %v213
        %v215 = vmul.f32 %v209, %v213
        %v216 = vlaneseq
        %v217 = vshrl.u32 %v216, 7
        %v218 = vsub.s32 0, %v217
        %v219 = vrot.slane %v207, %v218
        %v220 = vadd.f32 %v214, %v219
        %v221 = vadd.f32 %v215, %v219
        %v222 = vmax.f32 %v220, 0.0
        %v223 = vmax.f32 %v221, 0.0
        %v224 = vld [vmem:[#allocation4] sm:$0xff]
        %v225 = vld [vmem:[#allocation4 + $0x8] sm:$0xff]
        %v226 = vld [vmem:[#allocation4 + $0x10] sm:$0xff]
        %v227 = vld [vmem:[#allocation4 + $0x18] sm:$0xff]
        %v228 = vld [vmem:[#allocation4 + $0x20] sm:$0xff]
        %v229 = vld [vmem:[#allocation4 + $0x28] sm:$0xff]
        %v230 = vld [vmem:[#allocation4 + $0x30] sm:$0xff]
        %v231 = vld [vmem:[#allocation4 + $0x38] sm:$0xff]
        %v232 = vld [vmem:[#allocation4 + $0x40] sm:$0xff]
        %v233 = vld [vmem:[#allocation4 + $0x48] sm:$0xff]
        %v234 = vld [vmem:[#allocation4 + $0x50] sm:$0xff]
        %v235 = vld [vmem:[#allocation4 + $0x58] sm:$0xff]
        %v236 = vld [vmem:[#allocation4 + $0x60] sm:$0xff]
        %v237 = vld [vmem:[#allocation4 + $0x68] sm:$0xff]
        %v238 = vld [vmem:[#allocation4 + $0x70] sm:$0xff]
        %v239 = vld [vmem:[#allocation4 + $0x78] sm:$0xff]
        %s240 = scalar_lea.vmem [#allocation4], 128
        %v241 = vld [vmem:[%s240] ss:$8 sm:$0x3]
        %v243 = vlaneseq
        %v244 = vshrl.u32 %v243, 7
        %v245 = vsub.s32 0, %v244
        %v246 = vrot.slane %v241, %v245
        %v247 = vlaneseq
        %v248 = vshrl.u32 %v247, 7
        %v249 = vsub.s32 1, %v248
        %v250 = vrot.slane %v241, %v249
        %vm253 = vcmask 523264
        %v255 = vsel %vm253, %v222, 0
        %v258 = vsel %vm253, %v223, 0
        %v260 = vand.u32 %v225, 4294901760
        %261 = vmatprep.subr.mxu0 %v260
        %v262 = vand.u32 %v224, 4294901760
        %263 = vmatpush1.msra.mxu0 %v262
        %v264 = vand.u32 %v227, 4294901760
        %265 = vmatprep.subr.mxu0 %v264
        %v266 = vand.u32 %v226, 4294901760
        %267 = vmatpush1.msra.mxu0 %v266
        %v268 = vand.u32 %v229, 4294901760
        %269 = vmatprep.subr.mxu0 %v268
        %v270 = vand.u32 %v228, 4294901760
        %271 = vmatpush1.msra.mxu0 %v270
        %v272 = vand.u32 %v231, 4294901760
        %273 = vmatprep.subr.mxu0 %v272
        %v274 = vand.u32 %v230, 4294901760
        %275 = vmatpush1.msra.mxu0 %v274
        %v276 = vand.u32 %v233, 4294901760
        %277 = vmatprep.subr.mxu0 %v276
        %v278 = vand.u32 %v232, 4294901760
        %279 = vmatpush1.msra.mxu0 %v278
        %v280 = vand.u32 %v235, 4294901760
        %281 = vmatprep.subr.mxu0 %v280
        %v282 = vand.u32 %v234, 4294901760
        %283 = vmatpush1.msra.mxu0 %v282
        %v284 = vand.u32 %v237, 4294901760
        %285 = vmatprep.subr.mxu0 %v284
        %v286 = vand.u32 %v236, 4294901760
        %287 = vmatpush1.msra.mxu0 %v286
        %v288 = vand.u32 %v239, 4294901760
        %289 = vmatprep.subr.mxu0 %v288
        %v290 = vand.u32 %v238, 4294901760
        %291 = vmatpush1.msra.mxu0 %v290
        %292 = vmatprep.subr.mxu0 0.0
        %293 = vmatpush1.msra.mxu0 0.0
        %294 = vmatprep.subr.mxu0 0.0
        %295 = vmatpush1.msra.mxu0 0.0
        %296 = vmatprep.subr.mxu0 0.0
        %297 = vmatpush1.msra.mxu0 0.0
        %298 = vmatprep.subr.mxu0 0.0
        %299 = vmatpush1.msra.mxu0 0.0
        %300 = vmatprep.subr.mxu0 0.0
        %301 = vmatpush1.msra.mxu0 0.0
        %302 = vmatprep.subr.mxu0 0.0
        %303 = vmatpush1.msra.mxu0 0.0
        %304 = vmatprep.subr.mxu0 0.0
        %305 = vmatpush1.msra.mxu0 0.0
        %306 = vmatprep.subr.mxu0 0.0
        %307 = vmatpush1.msra.mxu0 0.0
        %308 = vmatprep.subr.mxu0 0.0
        %309 = vmatpush1.msra.mxu0 0.0
        %310 = vmatprep.subr.mxu0 0.0
        %311 = vmatpush1.msra.mxu0 0.0
        %312 = vmatprep.subr.mxu0 0.0
        %313 = vmatpush1.msra.mxu0 0.0
        %314 = vmatprep.subr.mxu0 0.0
        %315 = vmatpush1.msra.mxu0 0.0
        %316 = vmatprep.subr.mxu0 0.0
        %317 = vmatpush1.msra.mxu0 0.0
        %318 = vmatprep.subr.mxu0 0.0
        %319 = vmatpush1.msra.mxu0 0.0
        %320 = vmatprep.subr.mxu0 0.0
        %321 = vmatpush1.msra.mxu0 0.0
        %322 = vmatprep.subr.mxu0 0.0
        %323 = vmatpush1.msra.mxu0 0.0
        %324 = vmatprep.subr.mxu0 0.0
        %325 = vmatpush1.msra.mxu0 0.0
        %326 = vmatprep.subr.mxu0 0.0
        %327 = vmatpush1.msra.mxu0 0.0
        %328 = vmatprep.subr.mxu0 0.0
        %329 = vmatpush1.msra.mxu0 0.0
        %330 = vmatprep.subr.mxu0 0.0
        %331 = vmatpush1.msra.mxu0 0.0
        %332 = vmatprep.subr.mxu0 0.0
        %333 = vmatpush1.msra.mxu0 0.0
        %334 = vmatprep.subr.mxu0 0.0
        %335 = vmatpush1.msra.mxu0 0.0
        %336 = vmatprep.subr.mxu0 0.0
        %337 = vmatpush1.msra.mxu0 0.0
        %338 = vmatprep.subr.mxu0 0.0
        %339 = vmatpush1.msra.mxu0 0.0
        %340 = vmatprep.mubr.f32.mxu0 0.0
        %v341 = vand.u32 %v255, 4294901760
        %v342 = vsub.f32 %v255, %v341
        %v343 = vand.u32 %v342, 4294901760
        %v344 = vsub.f32 %v342, %v343
        %v345 = vand.u32 %v344, 4294901760
        %346 = vmatmul.mubr.f32.gmra.mrb[0].mxu0 %v345
        %v347 = vpop.f32.mrb[0].mxu0
        %v348 = vadd.f32 %v246, %v347
        %v349 = vpop.f32.mrb[0].mxu0
        %v350 = vadd.f32 %v250, %v349
        %351 = vmatprep.mubr.f32.mxu0 0.0
        %v352 = vand.u32 %v258, 4294901760
        %v353 = vsub.f32 %v258, %v352
        %v354 = vand.u32 %v353, 4294901760
        %v355 = vsub.f32 %v353, %v354
        %v356 = vand.u32 %v355, 4294901760
        %357 = vmatmul.mubr.f32.gmra.mrb[0].mxu0 %v356
        %v358 = vpop.f32.mrb[0].mxu0
        %v359 = vadd.f32 %v246, %v358
        %v360 = vpop.f32.mrb[0].mxu0
        %v361 = vadd.f32 %v250, %v360
        %362 = vdwg.mxu0
        %v363 = vand.u32 %v225, 4294901760
        %v364 = vsub.f32 %v225, %v363
        %v365 = vand.u32 %v364, 4294901760
        %v366 = vsub.f32 %v364, %v365
        %v367 = vand.u32 %v366, 4294901760
        %368 = vmatprep.subr.mxu0 %v367
        %v369 = vand.u32 %v224, 4294901760
        %v370 = vsub.f32 %v224, %v369
        %v371 = vand.u32 %v370, 4294901760
        %v372 = vsub.f32 %v370, %v371
        %v373 = vand.u32 %v372, 4294901760
        %374 = vmatpush1.msra.mxu0 %v373
        %v375 = vand.u32 %v227, 4294901760
        %v376 = vsub.f32 %v227, %v375
        %v377 = vand.u32 %v376, 4294901760
        %v378 = vsub.f32 %v376, %v377
        %v379 = vand.u32 %v378, 4294901760
        %380 = vmatprep.subr.mxu0 %v379
        %v381 = vand.u32 %v226, 4294901760
        %v382 = vsub.f32 %v226, %v381
        %v383 = vand.u32 %v382, 4294901760
        %v384 = vsub.f32 %v382, %v383
        %v385 = vand.u32 %v384, 4294901760
        %386 = vmatpush1.msra.mxu0 %v385
        %v387 = vand.u32 %v229, 4294901760
        %v388 = vsub.f32 %v229, %v387
        %v389 = vand.u32 %v388, 4294901760
        %v390 = vsub.f32 %v388, %v389
        %v391 = vand.u32 %v390, 4294901760
        %392 = vmatprep.subr.mxu0 %v391
        %v393 = vand.u32 %v228, 4294901760
        %v394 = vsub.f32 %v228, %v393
        %v395 = vand.u32 %v394, 4294901760
        %v396 = vsub.f32 %v394, %v395
        %v397 = vand.u32 %v396, 4294901760
        %398 = vmatpush1.msra.mxu0 %v397
        %v399 = vand.u32 %v231, 4294901760
        %v400 = vsub.f32 %v231, %v399
        %v401 = vand.u32 %v400, 4294901760
        %v402 = vsub.f32 %v400, %v401
        %v403 = vand.u32 %v402, 4294901760
        %404 = vmatprep.subr.mxu0 %v403
        %v405 = vand.u32 %v230, 4294901760
        %v406 = vsub.f32 %v230, %v405
        %v407 = vand.u32 %v406, 4294901760
        %v408 = vsub.f32 %v406, %v407
        %v409 = vand.u32 %v408, 4294901760
        %410 = vmatpush1.msra.mxu0 %v409
        %v411 = vand.u32 %v233, 4294901760
        %v412 = vsub.f32 %v233, %v411
        %v413 = vand.u32 %v412, 4294901760
        %v414 = vsub.f32 %v412, %v413
        %v415 = vand.u32 %v414, 4294901760
        %416 = vmatprep.subr.mxu0 %v415
        %v417 = vand.u32 %v232, 4294901760
        %v418 = vsub.f32 %v232, %v417
        %v419 = vand.u32 %v418, 4294901760
        %v420 = vsub.f32 %v418, %v419
        %v421 = vand.u32 %v420, 4294901760
        %422 = vmatpush1.msra.mxu0 %v421
        %v423 = vand.u32 %v235, 4294901760
        %v424 = vsub.f32 %v235, %v423
        %v425 = vand.u32 %v424, 4294901760
        %v426 = vsub.f32 %v424, %v425
        %v427 = vand.u32 %v426, 4294901760
        %428 = vmatprep.subr.mxu0 %v427
        %v429 = vand.u32 %v234, 4294901760
        %v430 = vsub.f32 %v234, %v429
        %v431 = vand.u32 %v430, 4294901760
        %v432 = vsub.f32 %v430, %v431
        %v433 = vand.u32 %v432, 4294901760
        %434 = vmatpush1.msra.mxu0 %v433
        %v435 = vand.u32 %v237, 4294901760
        %v436 = vsub.f32 %v237, %v435
        %v437 = vand.u32 %v436, 4294901760
        %v438 = vsub.f32 %v436, %v437
        %v439 = vand.u32 %v438, 4294901760
        %440 = vmatprep.subr.mxu0 %v439
        %v441 = vand.u32 %v236, 4294901760
        %v442 = vsub.f32 %v236, %v441
        %v443 = vand.u32 %v442, 4294901760
        %v444 = vsub.f32 %v442, %v443
        %v445 = vand.u32 %v444, 4294901760
        %446 = vmatpush1.msra.mxu0 %v445
        %v447 = vand.u32 %v239, 4294901760
        %v448 = vsub.f32 %v239, %v447
        %v449 = vand.u32 %v448, 4294901760
        %v450 = vsub.f32 %v448, %v449
        %v451 = vand.u32 %v450, 4294901760
        %452 = vmatprep.subr.mxu0 %v451
        %v453 = vand.u32 %v238, 4294901760
        %v454 = vsub.f32 %v238, %v453
        %v455 = vand.u32 %v454, 4294901760
        %v456 = vsub.f32 %v454, %v455
        %v457 = vand.u32 %v456, 4294901760
        %458 = vmatpush1.msra.mxu0 %v457
        %459 = vmatprep.subr.mxu0 0.0
        %460 = vmatpush1.msra.mxu0 0.0
        %461 = vmatprep.subr.mxu0 0.0
        %462 = vmatpush1.msra.mxu0 0.0
        %463 = vmatprep.subr.mxu0 0.0
        %464 = vmatpush1.msra.mxu0 0.0
        %465 = vmatprep.subr.mxu0 0.0
        %466 = vmatpush1.msra.mxu0 0.0
        %467 = vmatprep.subr.mxu0 0.0
        %468 = vmatpush1.msra.mxu0 0.0
        %469 = vmatprep.subr.mxu0 0.0
        %470 = vmatpush1.msra.mxu0 0.0
        %471 = vmatprep.subr.mxu0 0.0
        %472 = vmatpush1.msra.mxu0 0.0
        %473 = vmatprep.subr.mxu0 0.0
        %474 = vmatpush1.msra.mxu0 0.0
        %475 = vmatprep.subr.mxu0 0.0
        %476 = vmatpush1.msra.mxu0 0.0
        %477 = vmatprep.subr.mxu0 0.0
        %478 = vmatpush1.msra.mxu0 0.0
        %479 = vmatprep.subr.mxu0 0.0
        %480 = vmatpush1.msra.mxu0 0.0
        %481 = vmatprep.subr.mxu0 0.0
        %482 = vmatpush1.msra.mxu0 0.0
        %483 = vmatprep.subr.mxu0 0.0
        %484 = vmatpush1.msra.mxu0 0.0
        %485 = vmatprep.subr.mxu0 0.0
        %486 = vmatpush1.msra.mxu0 0.0
        %487 = vmatprep.subr.mxu0 0.0
        %488 = vmatpush1.msra.mxu0 0.0
        %489 = vmatprep.subr.mxu0 0.0
        %490 = vmatpush1.msra.mxu0 0.0
        %491 = vmatprep.subr.mxu0 0.0
        %492 = vmatpush1.msra.mxu0 0.0
        %493 = vmatprep.subr.mxu0 0.0
        %494 = vmatpush1.msra.mxu0 0.0
        %495 = vmatprep.subr.mxu0 0.0
        %496 = vmatpush1.msra.mxu0 0.0
        %497 = vmatprep.subr.mxu0 0.0
        %498 = vmatpush1.msra.mxu0 0.0
        %499 = vmatprep.subr.mxu0 0.0
        %500 = vmatpush1.msra.mxu0 0.0
        %501 = vmatprep.subr.mxu0 0.0
        %502 = vmatpush1.msra.mxu0 0.0
        %503 = vmatprep.subr.mxu0 0.0
        %504 = vmatpush1.msra.mxu0 0.0
        %505 = vmatprep.subr.mxu0 0.0
        %506 = vmatpush1.msra.mxu0 0.0
        %507 = vmatprep.mubr.f32.mxu0 0.0
        %v508 = vand.u32 %v255, 4294901760
        %509 = vmatmul.mubr.f32.gmra.mrb[0].mxu0 %v508
        %v510 = vpop.f32.mrb[0].mxu0
        %v511 = vadd.f32 %v348, %v510
        %v512 = vpop.f32.mrb[0].mxu0
        %v513 = vadd.f32 %v350, %v512
        %514 = vmatprep.mubr.f32.mxu0 0.0
        %v515 = vand.u32 %v258, 4294901760
        %516 = vmatmul.mubr.f32.gmra.mrb[0].mxu0 %v515
        %v517 = vpop.f32.mrb[0].mxu0
        %v518 = vadd.f32 %v359, %v517
        %v519 = vpop.f32.mrb[0].mxu0
        %v520 = vadd.f32 %v361, %v519
        %521 = vdwg.mxu0
        %v522 = vand.u32 %v225, 4294901760
        %v523 = vsub.f32 %v225, %v522
        %524 = vmatprep.subr.mxu0 %v523
        %v525 = vand.u32 %v224, 4294901760
        %v526 = vsub.f32 %v224, %v525
        %527 = vmatpush1.msra.mxu0 %v526
        %v528 = vand.u32 %v227, 4294901760
        %v529 = vsub.f32 %v227, %v528
        %530 = vmatprep.subr.mxu0 %v529
        %v531 = vand.u32 %v226, 4294901760
        %v532 = vsub.f32 %v226, %v531
        %533 = vmatpush1.msra.mxu0 %v532
        %v534 = vand.u32 %v229, 4294901760
        %v535 = vsub.f32 %v229, %v534
        %536 = vmatprep.subr.mxu0 %v535
        %v537 = vand.u32 %v228, 4294901760
        %v538 = vsub.f32 %v228, %v537
        %539 = vmatpush1.msra.mxu0 %v538
        %v540 = vand.u32 %v231, 4294901760
        %v541 = vsub.f32 %v231, %v540
        %542 = vmatprep.subr.mxu0 %v541
        %v543 = vand.u32 %v230, 4294901760
        %v544 = vsub.f32 %v230, %v543
        %545 = vmatpush1.msra.mxu0 %v544
        %v546 = vand.u32 %v233, 4294901760
        %v547 = vsub.f32 %v233, %v546
        %548 = vmatprep.subr.mxu0 %v547
        %v549 = vand.u32 %v232, 4294901760
        %v550 = vsub.f32 %v232, %v549
        %551 = vmatpush1.msra.mxu0 %v550
        %v552 = vand.u32 %v235, 4294901760
        %v553 = vsub.f32 %v235, %v552
        %554 = vmatprep.subr.mxu0 %v553
        %v555 = vand.u32 %v234, 4294901760
        %v556 = vsub.f32 %v234, %v555
        %557 = vmatpush1.msra.mxu0 %v556
        %v558 = vand.u32 %v237, 4294901760
        %v559 = vsub.f32 %v237, %v558
        %560 = vmatprep.subr.mxu0 %v559
        %v561 = vand.u32 %v236, 4294901760
        %v562 = vsub.f32 %v236, %v561
        %563 = vmatpush1.msra.mxu0 %v562
        %v564 = vand.u32 %v239, 4294901760
        %v565 = vsub.f32 %v239, %v564
        %566 = vmatprep.subr.mxu0 %v565
        %v567 = vand.u32 %v238, 4294901760
        %v568 = vsub.f32 %v238, %v567
        %569 = vmatpush1.msra.mxu0 %v568
        %570 = vmatprep.subr.mxu0 0.0
        %571 = vmatpush1.msra.mxu0 0.0
        %572 = vmatprep.subr.mxu0 0.0
        %573 = vmatpush1.msra.mxu0 0.0
        %574 = vmatprep.subr.mxu0 0.0
        %575 = vmatpush1.msra.mxu0 0.0
        %576 = vmatprep.subr.mxu0 0.0
        %577 = vmatpush1.msra.mxu0 0.0
        %578 = vmatprep.subr.mxu0 0.0
        %579 = vmatpush1.msra.mxu0 0.0
        %580 = vmatprep.subr.mxu0 0.0
        %581 = vmatpush1.msra.mxu0 0.0
        %582 = vmatprep.subr.mxu0 0.0
        %583 = vmatpush1.msra.mxu0 0.0
        %584 = vmatprep.subr.mxu0 0.0
        %585 = vmatpush1.msra.mxu0 0.0
        %586 = vmatprep.subr.mxu0 0.0
        %587 = vmatpush1.msra.mxu0 0.0
        %588 = vmatprep.subr.mxu0 0.0
        %589 = vmatpush1.msra.mxu0 0.0
        %590 = vmatprep.subr.mxu0 0.0
        %591 = vmatpush1.msra.mxu0 0.0
        %592 = vmatprep.subr.mxu0 0.0
        %593 = vmatpush1.msra.mxu0 0.0
        %594 = vmatprep.subr.mxu0 0.0
        %595 = vmatpush1.msra.mxu0 0.0
        %596 = vmatprep.subr.mxu0 0.0
        %597 = vmatpush1.msra.mxu0 0.0
        %598 = vmatprep.subr.mxu0 0.0
        %599 = vmatpush1.msra.mxu0 0.0
        %600 = vmatprep.subr.mxu0 0.0
        %601 = vmatpush1.msra.mxu0 0.0
        %602 = vmatprep.subr.mxu0 0.0
        %603 = vmatpush1.msra.mxu0 0.0
        %604 = vmatprep.subr.mxu0 0.0
        %605 = vmatpush1.msra.mxu0 0.0
        %606 = vmatprep.subr.mxu0 0.0
        %607 = vmatpush1.msra.mxu0 0.0
        %608 = vmatprep.subr.mxu0 0.0
        %609 = vmatpush1.msra.mxu0 0.0
        %610 = vmatprep.subr.mxu0 0.0
        %611 = vmatpush1.msra.mxu0 0.0
        %612 = vmatprep.subr.mxu0 0.0
        %613 = vmatpush1.msra.mxu0 0.0
        %614 = vmatprep.subr.mxu0 0.0
        %615 = vmatpush1.msra.mxu0 0.0
        %616 = vmatprep.subr.mxu0 0.0
        %617 = vmatpush1.msra.mxu0 0.0
        %618 = vmatprep.mubr.f32.mxu0 0.0
        %v619 = vand.u32 %v255, 4294901760
        %v620 = vsub.f32 %v255, %v619
        %621 = vmatmul.mubr.f32.gmra.mrb[0].mxu0 %v620
        %v622 = vpop.f32.mrb[0].mxu0
        %v623 = vadd.f32 %v511, %v622
        %v624 = vpop.f32.mrb[0].mxu0
        %v625 = vadd.f32 %v513, %v624
        %626 = vmatprep.mubr.f32.mxu0 0.0
        %v627 = vand.u32 %v258, 4294901760
        %v628 = vsub.f32 %v258, %v627
        %629 = vmatmul.mubr.f32.gmra.mrb[0].mxu0 %v628
        %v630 = vpop.f32.mrb[0].mxu0
        %v631 = vadd.f32 %v518, %v630
        %v632 = vpop.f32.mrb[0].mxu0
        %v633 = vadd.f32 %v520, %v632
        %634 = vdwg.mxu0
        %v635 = vand.u32 %v225, 4294901760
        %636 = vmatprep.subr.mxu0 %v635
        %v637 = vand.u32 %v224, 4294901760
        %638 = vmatpush1.msra.mxu0 %v637
        %v639 = vand.u32 %v227, 4294901760
        %640 = vmatprep.subr.mxu0 %v639
        %v641 = vand.u32 %v226, 4294901760
        %642 = vmatpush1.msra.mxu0 %v641
        %v643 = vand.u32 %v229, 4294901760
        %644 = vmatprep.subr.mxu0 %v643
        %v645 = vand.u32 %v228, 4294901760
        %646 = vmatpush1.msra.mxu0 %v645
        %v647 = vand.u32 %v231, 4294901760
        %648 = vmatprep.subr.mxu0 %v647
        %v649 = vand.u32 %v230, 4294901760
        %650 = vmatpush1.msra.mxu0 %v649
        %v651 = vand.u32 %v233, 4294901760
        %652 = vmatprep.subr.mxu0 %v651
        %v653 = vand.u32 %v232, 4294901760
        %654 = vmatpush1.msra.mxu0 %v653
        %v655 = vand.u32 %v235, 4294901760
        %656 = vmatprep.subr.mxu0 %v655
        %v657 = vand.u32 %v234, 4294901760
        %658 = vmatpush1.msra.mxu0 %v657
        %v659 = vand.u32 %v237, 4294901760
        %660 = vmatprep.subr.mxu0 %v659
        %v661 = vand.u32 %v236, 4294901760
        %662 = vmatpush1.msra.mxu0 %v661
        %v663 = vand.u32 %v239, 4294901760
        %664 = vmatprep.subr.mxu0 %v663
        %v665 = vand.u32 %v238, 4294901760
        %666 = vmatpush1.msra.mxu0 %v665
        %667 = vmatprep.subr.mxu0 0.0
        %668 = vmatpush1.msra.mxu0 0.0
        %669 = vmatprep.subr.mxu0 0.0
        %670 = vmatpush1.msra.mxu0 0.0
        %671 = vmatprep.subr.mxu0 0.0
        %672 = vmatpush1.msra.mxu0 0.0
        %673 = vmatprep.subr.mxu0 0.0
        %674 = vmatpush1.msra.mxu0 0.0
        %675 = vmatprep.subr.mxu0 0.0
        %676 = vmatpush1.msra.mxu0 0.0
        %677 = vmatprep.subr.mxu0 0.0
        %678 = vmatpush1.msra.mxu0 0.0
        %679 = vmatprep.subr.mxu0 0.0
        %680 = vmatpush1.msra.mxu0 0.0
        %681 = vmatprep.subr.mxu0 0.0
        %682 = vmatpush1.msra.mxu0 0.0
        %683 = vmatprep.subr.mxu0 0.0
        %684 = vmatpush1.msra.mxu0 0.0
        %685 = vmatprep.subr.mxu0 0.0
        %686 = vmatpush1.msra.mxu0 0.0
        %687 = vmatprep.subr.mxu0 0.0
        %688 = vmatpush1.msra.mxu0 0.0
        %689 = vmatprep.subr.mxu0 0.0
        %690 = vmatpush1.msra.mxu0 0.0
        %691 = vmatprep.subr.mxu0 0.0
        %692 = vmatpush1.msra.mxu0 0.0
        %693 = vmatprep.subr.mxu0 0.0
        %694 = vmatpush1.msra.mxu0 0.0
        %695 = vmatprep.subr.mxu0 0.0
        %696 = vmatpush1.msra.mxu0 0.0
        %697 = vmatprep.subr.mxu0 0.0
        %698 = vmatpush1.msra.mxu0 0.0
        %699 = vmatprep.subr.mxu0 0.0
        %700 = vmatpush1.msra.mxu0 0.0
        %701 = vmatprep.subr.mxu0 0.0
        %702 = vmatpush1.msra.mxu0 0.0
        %703 = vmatprep.subr.mxu0 0.0
        %704 = vmatpush1.msra.mxu0 0.0
        %705 = vmatprep.subr.mxu0 0.0
        %706 = vmatpush1.msra.mxu0 0.0
        %707 = vmatprep.subr.mxu0 0.0
        %708 = vmatpush1.msra.mxu0 0.0
        %709 = vmatprep.subr.mxu0 0.0
        %710 = vmatpush1.msra.mxu0 0.0
        %711 = vmatprep.subr.mxu0 0.0
        %712 = vmatpush1.msra.mxu0 0.0
        %713 = vmatprep.subr.mxu0 0.0
        %714 = vmatpush1.msra.mxu0 0.0
        %715 = vmatprep.mubr.f32.mxu0 0.0
        %v716 = vand.u32 %v255, 4294901760
        %v717 = vsub.f32 %v255, %v716
        %v718 = vand.u32 %v717, 4294901760
        %719 = vmatmul.mubr.f32.gmra.mrb[0].mxu0 %v718
        %v720 = vpop.f32.mrb[0].mxu0
        %v721 = vadd.f32 %v623, %v720
        %v722 = vpop.f32.mrb[0].mxu0
        %v723 = vadd.f32 %v625, %v722
        %724 = vmatprep.mubr.f32.mxu0 0.0
        %v725 = vand.u32 %v258, 4294901760
        %v726 = vsub.f32 %v258, %v725
        %v727 = vand.u32 %v726, 4294901760
        %728 = vmatmul.mubr.f32.gmra.mrb[0].mxu0 %v727
        %v729 = vpop.f32.mrb[0].mxu0
        %v730 = vadd.f32 %v631, %v729
        %v731 = vpop.f32.mrb[0].mxu0
        %v732 = vadd.f32 %v633, %v731
        %733 = vdwg.mxu0
        %v734 = vand.u32 %v225, 4294901760
        %v735 = vsub.f32 %v225, %v734
        %v736 = vand.u32 %v735, 4294901760
        %737 = vmatprep.subr.mxu0 %v736
        %v738 = vand.u32 %v224, 4294901760
        %v739 = vsub.f32 %v224, %v738
        %v740 = vand.u32 %v739, 4294901760
        %741 = vmatpush1.msra.mxu0 %v740
        %v742 = vand.u32 %v227, 4294901760
        %v743 = vsub.f32 %v227, %v742
        %v744 = vand.u32 %v743, 4294901760
        %745 = vmatprep.subr.mxu0 %v744
        %v746 = vand.u32 %v226, 4294901760
        %v747 = vsub.f32 %v226, %v746
        %v748 = vand.u32 %v747, 4294901760
        %749 = vmatpush1.msra.mxu0 %v748
        %v750 = vand.u32 %v229, 4294901760
        %v751 = vsub.f32 %v229, %v750
        %v752 = vand.u32 %v751, 4294901760
        %753 = vmatprep.subr.mxu0 %v752
        %v754 = vand.u32 %v228, 4294901760
        %v755 = vsub.f32 %v228, %v754
        %v756 = vand.u32 %v755, 4294901760
        %757 = vmatpush1.msra.mxu0 %v756
        %v758 = vand.u32 %v231, 4294901760
        %v759 = vsub.f32 %v231, %v758
        %v760 = vand.u32 %v759, 4294901760
        %761 = vmatprep.subr.mxu0 %v760
        %v762 = vand.u32 %v230, 4294901760
        %v763 = vsub.f32 %v230, %v762
        %v764 = vand.u32 %v763, 4294901760
        %765 = vmatpush1.msra.mxu0 %v764
        %v766 = vand.u32 %v233, 4294901760
        %v767 = vsub.f32 %v233, %v766
        %v768 = vand.u32 %v767, 4294901760
        %769 = vmatprep.subr.mxu0 %v768
        %v770 = vand.u32 %v232, 4294901760
        %v771 = vsub.f32 %v232, %v770
        %v772 = vand.u32 %v771, 4294901760
        %773 = vmatpush1.msra.mxu0 %v772
        %v774 = vand.u32 %v235, 4294901760
        %v775 = vsub.f32 %v235, %v774
        %v776 = vand.u32 %v775, 4294901760
        %777 = vmatprep.subr.mxu0 %v776
        %v778 = vand.u32 %v234, 4294901760
        %v779 = vsub.f32 %v234, %v778
        %v780 = vand.u32 %v779, 4294901760
        %781 = vmatpush1.msra.mxu0 %v780
        %v782 = vand.u32 %v237, 4294901760
        %v783 = vsub.f32 %v237, %v782
        %v784 = vand.u32 %v783, 4294901760
        %785 = vmatprep.subr.mxu0 %v784
        %v786 = vand.u32 %v236, 4294901760
        %v787 = vsub.f32 %v236, %v786
        %v788 = vand.u32 %v787, 4294901760
        %789 = vmatpush1.msra.mxu0 %v788
        %v790 = vand.u32 %v239, 4294901760
        %v791 = vsub.f32 %v239, %v790
        %v792 = vand.u32 %v791, 4294901760
        %793 = vmatprep.subr.mxu0 %v792
        %v794 = vand.u32 %v238, 4294901760
        %v795 = vsub.f32 %v238, %v794
        %v796 = vand.u32 %v795, 4294901760
        %797 = vmatpush1.msra.mxu0 %v796
        %798 = vmatprep.subr.mxu0 0.0
        %799 = vmatpush1.msra.mxu0 0.0
        %800 = vmatprep.subr.mxu0 0.0
        %801 = vmatpush1.msra.mxu0 0.0
        %802 = vmatprep.subr.mxu0 0.0
        %803 = vmatpush1.msra.mxu0 0.0
        %804 = vmatprep.subr.mxu0 0.0
        %805 = vmatpush1.msra.mxu0 0.0
        %806 = vmatprep.subr.mxu0 0.0
        %807 = vmatpush1.msra.mxu0 0.0
        %808 = vmatprep.subr.mxu0 0.0
        %809 = vmatpush1.msra.mxu0 0.0
        %810 = vmatprep.subr.mxu0 0.0
        %811 = vmatpush1.msra.mxu0 0.0
        %812 = vmatprep.subr.mxu0 0.0
        %813 = vmatpush1.msra.mxu0 0.0
        %814 = vmatprep.subr.mxu0 0.0
        %815 = vmatpush1.msra.mxu0 0.0
        %816 = vmatprep.subr.mxu0 0.0
        %817 = vmatpush1.msra.mxu0 0.0
        %818 = vmatprep.subr.mxu0 0.0
        %819 = vmatpush1.msra.mxu0 0.0
        %820 = vmatprep.subr.mxu0 0.0
        %821 = vmatpush1.msra.mxu0 0.0
        %822 = vmatprep.subr.mxu0 0.0
        %823 = vmatpush1.msra.mxu0 0.0
        %824 = vmatprep.subr.mxu0 0.0
        %825 = vmatpush1.msra.mxu0 0.0
        %826 = vmatprep.subr.mxu0 0.0
        %827 = vmatpush1.msra.mxu0 0.0
        %828 = vmatprep.subr.mxu0 0.0
        %829 = vmatpush1.msra.mxu0 0.0
        %830 = vmatprep.subr.mxu0 0.0
        %831 = vmatpush1.msra.mxu0 0.0
        %832 = vmatprep.subr.mxu0 0.0
        %833 = vmatpush1.msra.mxu0 0.0
        %834 = vmatprep.subr.mxu0 0.0
        %835 = vmatpush1.msra.mxu0 0.0
        %836 = vmatprep.subr.mxu0 0.0
        %837 = vmatpush1.msra.mxu0 0.0
        %838 = vmatprep.subr.mxu0 0.0
        %839 = vmatpush1.msra.mxu0 0.0
        %840 = vmatprep.subr.mxu0 0.0
        %841 = vmatpush1.msra.mxu0 0.0
        %842 = vmatprep.subr.mxu0 0.0
        %843 = vmatpush1.msra.mxu0 0.0
        %844 = vmatprep.subr.mxu0 0.0
        %845 = vmatpush1.msra.mxu0 0.0
        %846 = vmatprep.mubr.f32.mxu0 0.0
        %v847 = vand.u32 %v255, 4294901760
        %848 = vmatmul.mubr.f32.gmra.mrb[0].mxu0 %v847
        %v849 = vpop.f32.mrb[0].mxu0
        %v850 = vadd.f32 %v721, %v849
        %v851 = vpop.f32.mrb[0].mxu0
        %v852 = vadd.f32 %v723, %v851
        %853 = vmatprep.mubr.f32.mxu0 0.0
        %v854 = vand.u32 %v258, 4294901760
        %855 = vmatmul.mubr.f32.gmra.mrb[0].mxu0 %v854
        %v856 = vpop.f32.mrb[0].mxu0
        %v857 = vadd.f32 %v730, %v856
        %v858 = vpop.f32.mrb[0].mxu0
        %v859 = vadd.f32 %v732, %v858
        %860 = vdwg.mxu0
        %v861 = vand.u32 %v225, 4294901760
        %862 = vmatprep.subr.mxu0 %v861
        %v863 = vand.u32 %v224, 4294901760
        %864 = vmatpush1.msra.mxu0 %v863
        %v865 = vand.u32 %v227, 4294901760
        %866 = vmatprep.subr.mxu0 %v865
        %v867 = vand.u32 %v226, 4294901760
        %868 = vmatpush1.msra.mxu0 %v867
        %v869 = vand.u32 %v229, 4294901760
        %870 = vmatprep.subr.mxu0 %v869
        %v871 = vand.u32 %v228, 4294901760
        %872 = vmatpush1.msra.mxu0 %v871
        %v873 = vand.u32 %v231, 4294901760
        %874 = vmatprep.subr.mxu0 %v873
        %v875 = vand.u32 %v230, 4294901760
        %876 = vmatpush1.msra.mxu0 %v875
        %v877 = vand.u32 %v233, 4294901760
        %878 = vmatprep.subr.mxu0 %v877
        %v879 = vand.u32 %v232, 4294901760
        %880 = vmatpush1.msra.mxu0 %v879
        %v881 = vand.u32 %v235, 4294901760
        %882 = vmatprep.subr.mxu0 %v881
        %v883 = vand.u32 %v234, 4294901760
        %884 = vmatpush1.msra.mxu0 %v883
        %v885 = vand.u32 %v237, 4294901760
        %886 = vmatprep.subr.mxu0 %v885
        %v887 = vand.u32 %v236, 4294901760
        %888 = vmatpush1.msra.mxu0 %v887
        %v889 = vand.u32 %v239, 4294901760
        %890 = vmatprep.subr.mxu0 %v889
        %v891 = vand.u32 %v238, 4294901760
        %892 = vmatpush1.msra.mxu0 %v891
        %893 = vmatprep.subr.mxu0 0.0
        %894 = vmatpush1.msra.mxu0 0.0
        %895 = vmatprep.subr.mxu0 0.0
        %896 = vmatpush1.msra.mxu0 0.0
        %897 = vmatprep.subr.mxu0 0.0
        %898 = vmatpush1.msra.mxu0 0.0
        %899 = vmatprep.subr.mxu0 0.0
        %900 = vmatpush1.msra.mxu0 0.0
        %901 = vmatprep.subr.mxu0 0.0
        %902 = vmatpush1.msra.mxu0 0.0
        %903 = vmatprep.subr.mxu0 0.0
        %904 = vmatpush1.msra.mxu0 0.0
        %905 = vmatprep.subr.mxu0 0.0
        %906 = vmatpush1.msra.mxu0 0.0
        %907 = vmatprep.subr.mxu0 0.0
        %908 = vmatpush1.msra.mxu0 0.0
        %909 = vmatprep.subr.mxu0 0.0
        %910 = vmatpush1.msra.mxu0 0.0
        %911 = vmatprep.subr.mxu0 0.0
        %912 = vmatpush1.msra.mxu0 0.0
        %913 = vmatprep.subr.mxu0 0.0
        %914 = vmatpush1.msra.mxu0 0.0
        %915 = vmatprep.subr.mxu0 0.0
        %916 = vmatpush1.msra.mxu0 0.0
        %917 = vmatprep.subr.mxu0 0.0
        %918 = vmatpush1.msra.mxu0 0.0
        %919 = vmatprep.subr.mxu0 0.0
        %920 = vmatpush1.msra.mxu0 0.0
        %921 = vmatprep.subr.mxu0 0.0
        %922 = vmatpush1.msra.mxu0 0.0
        %923 = vmatprep.subr.mxu0 0.0
        %924 = vmatpush1.msra.mxu0 0.0
        %925 = vmatprep.subr.mxu0 0.0
        %926 = vmatpush1.msra.mxu0 0.0
        %927 = vmatprep.subr.mxu0 0.0
        %928 = vmatpush1.msra.mxu0 0.0
        %929 = vmatprep.subr.mxu0 0.0
        %930 = vmatpush1.msra.mxu0 0.0
        %931 = vmatprep.subr.mxu0 0.0
        %932 = vmatpush1.msra.mxu0 0.0
        %933 = vmatprep.subr.mxu0 0.0
        %934 = vmatpush1.msra.mxu0 0.0
        %935 = vmatprep.subr.mxu0 0.0
        %936 = vmatpush1.msra.mxu0 0.0
        %937 = vmatprep.subr.mxu0 0.0
        %938 = vmatpush1.msra.mxu0 0.0
        %939 = vmatprep.subr.mxu0 0.0
        %940 = vmatpush1.msra.mxu0 0.0
        %941 = vmatprep.mubr.f32.mxu0 0.0
        %v942 = vand.u32 %v255, 4294901760
        %943 = vmatmul.mubr.f32.gmra.mrb[0].mxu0 %v942
        %v944 = vpop.f32.mrb[0].mxu0
        %v945 = vadd.f32 %v850, %v944
        %v946 = vpop.f32.mrb[0].mxu0
        %v947 = vadd.f32 %v852, %v946
        %948 = vmatprep.mubr.f32.mxu0 0.0
        %v949 = vand.u32 %v258, 4294901760
        %950 = vmatmul.mubr.f32.gmra.mrb[0].mxu0 %v949
        %v951 = vpop.f32.mrb[0].mxu0
        %v952 = vadd.f32 %v857, %v951
        %v953 = vpop.f32.mrb[0].mxu0
        %v954 = vadd.f32 %v859, %v953
        %955 = vdwg.mxu0
        %s956 = scalar_lea.vmem [#allocation4], 129
        %v957 = vld [vmem:[%s956] ss:$8 sm:$0x3]
        %v958 = vlaneseq
        %vm959 = vcmp.ge.s32.totalorder %v958, 0
        %vm960 = vcmp.lt.s32.totalorder %v958, 144
        %vm961 = vmand %vm959, %vm960
        %962 = vst.msk [vmem:[%s205] ss:$8 sm:$0x3] %vm961, %v957
        %963 = vst.msk [vmem:[%s205] ss:$8 sm:$0x0] %vm961, %v957
        %s964 = scalar_lea.vmem %s205, 33
        %965 = vst.msk [vmem:[%s964] ss:$8 sm:$0x3] %vm961, %v957
        %966 = vst.msk [vmem:[%s964] ss:$8 sm:$0x0] %vm961, %v957
        %vm971 = vcmask 1040384
        %v972 = vrot.slane %v945, 7
        %v973 = vrot.slane %v947, 7
        %v974 = vrot.slane %v952, 7
        %v975 = vsel %vm971, %v972, %v974
        %v976 = vrot.slane %v954, 7
        %v977 = vsel %vm971, %v973, %v976
        %984 = vst [vmem:[%s205] sm:$0xfe] %v972
        %vm985 = vcmask 130049
        %986 = vst.msk [vmem:[%s205 + $0x8] sm:$0xfe] %vm985, %v973
        %987 = vst [vmem:[%s205 + $0x10] sm:$0xff] %v975
        %vm988 = vcmask 130048
        %989 = vst.msk [vmem:[%s205 + $0x18] sm:$0xff] %vm988, %v977
        %990 = vst [vmem:[%s205 + $0x20] sm:$0x1] %v974
        %vm991 = vcmask 122880
        %992 = vst.msk [vmem:[%s205 + $0x28] sm:$0x1] %vm991, %v976
        %p993 = scmp.lt.s32.totalorder %s18, 1
        %s994 = scalar_select %p993, %s18, 1
        %s995 = smul.addr %s994, 6
        %s996 = smul.addr %s995, 8
        %s997 = scalar_lea.vmem %s3, %s996
        // Predicated region
        $region41: #{tpu_custom_call.1} parent=31 // pred_check
          %p998 = pneg %p104
        $region42: #{tpu_custom_call.1} parent=31 // pred_check_branch
          %1000 = sbr.rel (%p998) target = $region44
        $region43: #{tpu_custom_call.1} parent=31 // pred_region
          _
        $region44: #{tpu_custom_call.1} parent=31 // pred_fallthru
          _
      $region32: #{tpu_custom_call.1} parent=5 // pred_fallthru
        _
      %p1001 = scmp.le.s32.totalorder 2, %s13
      // Predicated region
      $region45: #{tpu_custom_call.1} parent=5 // pred_check
        %p1002 = pneg %p1001
      $region46: #{tpu_custom_call.1} parent=5 // pred_check_branch
        %1004 = sbr.rel (%p1002) target = $region48
      $region47: #{tpu_custom_call.1} parent=5 // pred_region
        %s1005 = ssub.s32 %s13, 2
        // Predicated region
        $region49: #{tpu_custom_call.1} parent=47 // pred_check
          %p1006 = pneg %p110
        $region50: #{tpu_custom_call.1} parent=47 // pred_check_branch
          %1008 = sbr.rel (%p1006) target = $region52
        $region51: #{tpu_custom_call.1} parent=47 // pred_region
          %p1009 = scmp.lt.s32.totalorder %s19, 1
          %s1010 = scalar_select %p1009, %s19, 1
          %s1011 = smul.addr %s1010, 6
          %s1012 = smul.addr %s1011, 8
          %s1013 = scalar_lea.vmem %s3, %s1012
        $region52: #{tpu_custom_call.1} parent=47 // pred_fallthru
          _
      $region48: #{tpu_custom_call.1} parent=5 // pred_fallthru
        _
    $region6: #{tpu_custom_call.1} parent=1 // loop_footer
      %s17 = sadd.s32 1, %s13
    $region7: #{tpu_custom_call.1} parent=1 // loop_footer_branch
      %12 = sbr.rel target = $region3
    $region8: #{tpu_custom_call.1} parent=1 // loop_exit
      _
    %1014 = vsyncpa [#allocation3], 1
    %s1015 = scalar_lea.sflag [#allocation3], 1
    %1016 = vsyncpa %s1015, 1
    %1017 = vsyncpa [#allocation5], 1

</llo_original>
